<compile_context>
chip_gen: v6e
topology: v6e:2x2x1
jax: 0.10.0
libtpu: 0.0.40
codegen_flags: <defaults>
</compile_context>

<pallas_src>
import functools

import jax
import jax.numpy as jnp
from jax.experimental import pallas as pl
from jax.experimental.pallas import tpu as pltpu

_LANES = 128


def _round_down(x, m):
    return (x // m) * m


def _round_up(x, m):
    return ((x + m - 1) // m) * m


def _vmem_capacity_bytes():
    try:
        info = pltpu.get_tpu_info()
        cap = int(getattr(info, "vmem_capacity_bytes", 0))
        if cap > 0:
            return cap
    except Exception:
        pass
    return 64 * 1024 * 1024  # conservative (v7x-like) default


def _ce_partial_kernel(logits_ref, target_ref, sum_ref, cnt_ref, *,
                       num_classes, num_pixels, tile_rows, pb):
    """One (image, row-block) grid step.

    logits_ref: (C, tile_rows, 128) — class axis leading => pure-VPU reduce.
    target_ref: (tile_rows, 128)    — integer labels (any <=32-bit int dtype).
    sum_ref / cnt_ref: (pb, 128)    — lane-dense per-block partials.
    """
    C = logits_ref.shape[0]
    t = target_ref[...].astype(jnp.int32)

    # Global pixel index of every lane: masks both the 128-pad tail of a
    # ragged image and the garbage rows of a partial (out-of-bounds) block.
    row0 = pl.program_id(1) * tile_rows
    rows = jax.lax.broadcasted_iota(jnp.int32, (tile_rows, _LANES), 0) + row0
    lanes = jax.lax.broadcasted_iota(jnp.int32, (tile_rows, _LANES), 1)
    pix = rows * _LANES + lanes
    valid = (t != num_classes) & (pix < num_pixels)
    # NOTE: labels outside [0, num_classes] silently give loss = logsumexp for
    # that pixel (PyTorch would raise).  Harmless for well-formed inputs.

    # Pass 1: running max over the (leading) class axis — C VPU maxes over
    # (tile_rows, 128) slabs; no (C, T, 128) temporaries, no cross-lane work.
    m = logits_ref[0].astype(jnp.float32)
    for c in range(1, C):
        m = jnp.maximum(m, logits_ref[c].astype(jnp.float32))

    # Pass 2: accumulate sum(exp(x - m)) and the target-class logit.  The
    # target gather is fused as a per-class select (no one-hot / iota slab).
    acc_exp = jnp.zeros((tile_rows, _LANES), jnp.float32)
    x_t = jnp.zeros((tile_rows, _LANES), jnp.float32)
    for c in range(C):
        xc = logits_ref[c].astype(jnp.float32)
        acc_exp = acc_exp + jnp.exp(xc - m)
        x_t = x_t + jnp.where(t == c, xc, 0.0)

    loss = jnp.where(valid, (m - x_t) + jnp.log(acc_exp), 0.0)
    cnt = valid.astype(jnp.float32)

    # Lane-dense partials: leading-axis tree reduce (VPU adds) into a single
    # unmasked (pb,128) store — no scalar XLU reduce, no masked (1,1) writeback.
    nch = tile_rows // pb
    sum_ref[...] = loss.reshape(nch, pb, _LANES).sum(axis=0)
    cnt_ref[...] = cnt.reshape(nch, pb, _LANES).sum(axis=0)


def cross_entropy_with_nan_mask(output, target, *, num_classes, tile_rows=None):
    """output: (N, C, H, W) float logits; target: (N, H, W) integer labels.
    Labels equal to num_classes are ignored.  Returns the scalar mean loss."""
    N, C, H, W = output.shape
    P = H * W
    Pr = _round_up(P, _LANES) // _LANES          # rows of 128 pixels (ceil)

    # Keep labels narrow in HBM (the kernel widens in-register).  Only cast if
    # wider than 32-bit (that cast is an extra HBM pass — avoid upstream).
    tgt = target
    if jnp.dtype(tgt.dtype).itemsize > 4:
        tgt = tgt.astype(jnp.int32)
    log_is = jnp.dtype(output.dtype).itemsize
    tgt_is = jnp.dtype(tgt.dtype).itemsize
    # sublane-packing granule: f32->8, bf16->16, int8->32 (take the stricter).
    granule = max(8 * (4 // log_is), 8 * (4 // tgt_is))

    # --- generation-aware tile sizing ---
    vmem_cap = _vmem_capacity_bytes()
    small_vmem = vmem_cap <= 64 * 1024 * 1024     # v7x-like: 64 MiB/TC, 2 TCs
    block_budget = (5 if small_vmem else 8) * 1024 * 1024
    vmem_limit = (40 if small_vmem else 64) * 1024 * 1024

    if tile_rows is None:
        tile_rows = max(granule,
                        _round_down(block_budget // (C * _LANES * log_is), granule))
        if small_vmem and N * pl.cdiv(Pr, tile_rows) < 8 and Pr > granule:
            # keep >= ~8 grid blocks so both v7x TensorCores stay busy
            rb_want = pl.cdiv(8, N)
            cand = max(granule, _round_up(pl.cdiv(Pr, rb_want), granule))
            tile_rows = min(tile_rows, cand)
    else:
        tile_rows = max(1, int(tile_rows))
        if tile_rows > granule:
            tile_rows = _round_down(tile_rows, granule)

    # Fit the block to the per-image pixel-row extent (legal BlockSpec dims).
    if Pr <= granule:
        tile_rows = Pr                            # full-dim block is allowed
    elif Pr % granule == 0:
        tile_rows = min(tile_rows, Pr)
    else:
        tile_rows = min(tile_rows, _round_down(Pr, granule))

    num_row_blocks = pl.cdiv(Pr, tile_rows)       # partial tail block is fine
    pb = 8 if tile_rows % 8 == 0 else tile_rows   # partial-output sublane dim

    # Free contiguous flatten.  Pad only when H*W is not a multiple of 128
    # (one extra HBM pass in that rare case); the ragged tail inside a block
    # is handled in-kernel by the global pixel-index mask, never by padding.
    logits = output.reshape(N, C, P)
    tgt = tgt.reshape(N, P)
    P128 = Pr * _LANES
    if P128 != P:
        logits = jnp.pad(logits, ((0, 0), (0, 0), (0, P128 - P)))
        tgt = jnp.pad(tgt, ((0, 0), (0, P128 - P)))   # pad value irrelevant (masked)
    logits = logits.reshape(N, C, Pr, _LANES)
    tgt = tgt.reshape(N, Pr, _LANES)

    kernel = functools.partial(
        _ce_partial_kernel, num_classes=num_classes, num_pixels=P,
        tile_rows=tile_rows, pb=pb)

    part_shape = jax.ShapeDtypeStruct((N, num_row_blocks, pb, _LANES), jnp.float32)
    part_spec = pl.BlockSpec((None, None, pb, _LANES), lambda n, r: (n, r, 0, 0))

    sums, cnts = pl.pallas_call(
        kernel,
        out_shape=(part_shape, part_shape),
        grid=(N, num_row_blocks),
        in_specs=[
            pl.BlockSpec((None, C, tile_rows, _LANES), lambda n, r: (n, 0, r, 0)),
            pl.BlockSpec((None, tile_rows, _LANES), lambda n, r: (n, r, 0)),
        ],
        out_specs=(part_spec, part_spec),
        compiler_params=pltpu.CompilerParams(
            dimension_semantics=("parallel", "parallel"),
            vmem_limit_bytes=vmem_limit,
        ),
    )(logits, tgt)

    # Final mean in plain JAX (tiny).  If every pixel is ignored this is 0/0
    # -> NaN, matching PyTorch's behaviour.
    return jnp.sum(sums) / jnp.sum(cnts)


def _reference(output, target, num_classes):
    N, C, H, W = output.shape
    logits = jnp.transpose(output, (0, 2, 3, 1)).reshape(-1, C).astype(jnp.float32)
    tg = target.reshape(-1)
    logp = jax.nn.log_softmax(logits, axis=-1)
    valid = tg != num_classes
    safe = jnp.where(valid, tg, 0)
    nll = -jnp.take_along_axis(logp, safe[:, None], axis=-1)[:, 0]
    nll = jnp.where(valid, nll, 0.0)
    return jnp.sum(nll) / jnp.sum(valid.astype(jnp.float32))


if __name__ == "__main__":
    key = jax.random.PRNGKey(0)
    k1, k2, k3, k4, k5, k6 = jax.random.split(key, 6)

    # 1) Primary check: standard small NCHW shape (P divisible by 128).
    num_classes = 4
    N, C, H, W = 2, num_classes, 16, 16
    x = jax.random.normal(k1, (N, C, H, W), dtype=jnp.float32)
    t = jax.random.randint(k2, (N, H, W), 0, num_classes + 1, dtype=jnp.int32)
    loss = jax.block_until_ready(cross_entropy_with_nan_mask(x, t, num_classes=num_classes))
    ref = _reference(x, t, num_classes)
    assert jnp.allclose(loss, ref, atol=1e-5, rtol=1e-5), (loss, ref)

    # 2) Odd spatial size: exercises the P % 128 != 0 pad + pixel-index mask.
    nc2 = 3
    x2 = jax.random.normal(k3, (1, nc2, 5, 7), dtype=jnp.float32)
    t2 = jax.random.randint(k4, (1, 5, 7), 0, nc2 + 1, dtype=jnp.int32)
    loss2 = jax.block_until_ready(cross_entropy_with_nan_mask(x2, t2, num_classes=nc2))
    ref2 = _reference(x2, t2, nc2)
    assert jnp.allclose(loss2, ref2, atol=1e-5, rtol=1e-5), (loss2, ref2)

    # 3) Pr not a multiple of tile_rows: exercises the partial (OOB) row block
    #    masked in-kernel by the global pixel index (no padding at all).
    nc3 = 4
    x3 = jax.random.normal(k5, (2, nc3, 48, 48), dtype=jnp.float32)
    t3 = jax.random.randint(k6, (2, 48, 48), 0, nc3 + 1, dtype=jnp.int32)
    loss3 = jax.block_until_ready(cross_entropy_with_nan_mask(x3, t3, num_classes=nc3))
    ref3 = _reference(x3, t3, nc3)
    assert jnp.allclose(loss3, ref3, atol=1e-5, rtol=1e-5), (loss3, ref3)

    print("KERNEL_OK")
</pallas_src>

<mosaic_0001>
module attributes {stable_mosaic.version = 11 : i64} {
  func.func @_ce_partial_kernel(%arg0: i32, %arg1: i32, %arg2: memref<1x4x2x128xf32, #tpu.memory_space<vmem>>, %arg3: memref<1x2x128xi32, #tpu.memory_space<vmem>>, %arg4: memref<1x1x2x128xf32, #tpu.memory_space<vmem>>, %arg5: memref<1x1x2x128xf32, #tpu.memory_space<vmem>>) attributes {dimension_semantics = [#tpu.dimension_semantics<parallel>, #tpu.dimension_semantics<parallel>], iteration_bounds = array<i64: 2, 1>, scalar_prefetch = 0 : i64, scratch_operands = 0 : i64, tpu.core_type = #tpu.core_type<tc>, window_params = [{transform_indices = @transform_0, window_bounds = array<i64: 1, 4, 2, 128>}, {transform_indices = @transform_1, window_bounds = array<i64: 1, 2, 128>}, {transform_indices = @transform_2, window_bounds = array<i64: 1, 1, 2, 128>}, {transform_indices = @transform_3, window_bounds = array<i64: 1, 1, 2, 128>}]} {
    %c0 = arith.constant 0 : index
    %c0_0 = arith.constant 0 : index
    %c0_1 = arith.constant 0 : index
    %0 = vector.load %arg3[%c0, %c0_0, %c0_1] : memref<1x2x128xi32, #tpu.memory_space<vmem>>, vector<1x2x128xi32>
    %1 = vector.shape_cast %0 : vector<1x2x128xi32> to vector<2x128xi32>
    %c2_i32 = arith.constant 2 : i32
    %2 = arith.muli %arg1, %c2_i32 : i32
    %3 = tpu.iota {dimensions = array<i32: 0>} : vector<2x128xi32>
    %4 = vector.broadcast %2 : i32 to vector<2x128xi32>
    %5 = arith.addi %3, %4 : vector<2x128xi32>
    %6 = tpu.iota {dimensions = array<i32: 1>} : vector<2x128xi32>
    %c128_i32 = arith.constant 128 : i32
    %7 = vector.broadcast %c128_i32 : i32 to vector<2x128xi32>
    %8 = arith.muli %5, %7 : vector<2x128xi32>
    %9 = arith.addi %8, %6 : vector<2x128xi32>
    %c4_i32 = arith.constant 4 : i32
    %10 = vector.broadcast %c4_i32 : i32 to vector<2x128xi32>
    %11 = arith.cmpi ne, %1, %10 : vector<2x128xi32>
    %c256_i32 = arith.constant 256 : i32
    %12 = vector.broadcast %c256_i32 : i32 to vector<2x128xi32>
    %13 = arith.cmpi slt, %9, %12 : vector<2x128xi32>
    %14 = arith.andi %11, %13 : vector<2x128xi1>
    %c0_2 = arith.constant 0 : index
    %c0_3 = arith.constant 0 : index
    %c0_4 = arith.constant 0 : index
    %c0_5 = arith.constant 0 : index
    %15 = vector.load %arg2[%c0_2, %c0_3, %c0_4, %c0_5] : memref<1x4x2x128xf32, #tpu.memory_space<vmem>>, vector<1x1x2x128xf32>
    %16 = vector.shape_cast %15 : vector<1x1x2x128xf32> to vector<2x128xf32>
    %c0_6 = arith.constant 0 : index
    %c1 = arith.constant 1 : index
    %c0_7 = arith.constant 0 : index
    %c0_8 = arith.constant 0 : index
    %17 = vector.load %arg2[%c0_6, %c1, %c0_7, %c0_8] : memref<1x4x2x128xf32, #tpu.memory_space<vmem>>, vector<1x1x2x128xf32>
    %18 = vector.shape_cast %17 : vector<1x1x2x128xf32> to vector<2x128xf32>
    %19 = arith.maximumf %16, %18 : vector<2x128xf32>
    %c0_9 = arith.constant 0 : index
    %c2 = arith.constant 2 : index
    %c0_10 = arith.constant 0 : index
    %c0_11 = arith.constant 0 : index
    %20 = vector.load %arg2[%c0_9, %c2, %c0_10, %c0_11] : memref<1x4x2x128xf32, #tpu.memory_space<vmem>>, vector<1x1x2x128xf32>
    %21 = vector.shape_cast %20 : vector<1x1x2x128xf32> to vector<2x128xf32>
    %22 = arith.maximumf %19, %21 : vector<2x128xf32>
    %c0_12 = arith.constant 0 : index
    %c3 = arith.constant 3 : index
    %c0_13 = arith.constant 0 : index
    %c0_14 = arith.constant 0 : index
    %23 = vector.load %arg2[%c0_12, %c3, %c0_13, %c0_14] : memref<1x4x2x128xf32, #tpu.memory_space<vmem>>, vector<1x1x2x128xf32>
    %24 = vector.shape_cast %23 : vector<1x1x2x128xf32> to vector<2x128xf32>
    %25 = arith.maximumf %22, %24 : vector<2x128xf32>
    %cst = arith.constant 0.000000e+00 : f32
    %26 = vector.broadcast %cst : f32 to vector<2x128xf32>
    %cst_15 = arith.constant 0.000000e+00 : f32
    %27 = vector.broadcast %cst_15 : f32 to vector<2x128xf32>
    %c0_16 = arith.constant 0 : index
    %c0_17 = arith.constant 0 : index
    %c0_18 = arith.constant 0 : index
    %c0_19 = arith.constant 0 : index
    %28 = vector.load %arg2[%c0_16, %c0_17, %c0_18, %c0_19] : memref<1x4x2x128xf32, #tpu.memory_space<vmem>>, vector<1x1x2x128xf32>
    %29 = vector.shape_cast %28 : vector<1x1x2x128xf32> to vector<2x128xf32>
    %30 = arith.subf %29, %25 : vector<2x128xf32>
    %31 = math.exp %30 : vector<2x128xf32>
    %32 = arith.addf %26, %31 : vector<2x128xf32>
    %c0_i32 = arith.constant 0 : i32
    %33 = vector.broadcast %c0_i32 : i32 to vector<2x128xi32>
    %34 = arith.cmpi eq, %1, %33 : vector<2x128xi32>
    %cst_20 = arith.constant 0.000000e+00 : f32
    %35 = vector.broadcast %cst_20 : f32 to vector<2x128xf32>
    %36 = arith.select %34, %29, %35 : vector<2x128xi1>, vector<2x128xf32>
    %37 = arith.addf %27, %36 : vector<2x128xf32>
    %c0_21 = arith.constant 0 : index
    %c1_22 = arith.constant 1 : index
    %c0_23 = arith.constant 0 : index
    %c0_24 = arith.constant 0 : index
    %38 = vector.load %arg2[%c0_21, %c1_22, %c0_23, %c0_24] : memref<1x4x2x128xf32, #tpu.memory_space<vmem>>, vector<1x1x2x128xf32>
    %39 = vector.shape_cast %38 : vector<1x1x2x128xf32> to vector<2x128xf32>
    %40 = arith.subf %39, %25 : vector<2x128xf32>
    %41 = math.exp %40 : vector<2x128xf32>
    %42 = arith.addf %32, %41 : vector<2x128xf32>
    %c1_i32 = arith.constant 1 : i32
    %43 = vector.broadcast %c1_i32 : i32 to vector<2x128xi32>
    %44 = arith.cmpi eq, %1, %43 : vector<2x128xi32>
    %cst_25 = arith.constant 0.000000e+00 : f32
    %45 = vector.broadcast %cst_25 : f32 to vector<2x128xf32>
    %46 = arith.select %44, %39, %45 : vector<2x128xi1>, vector<2x128xf32>
    %47 = arith.addf %37, %46 : vector<2x128xf32>
    %c0_26 = arith.constant 0 : index
    %c2_27 = arith.constant 2 : index
    %c0_28 = arith.constant 0 : index
    %c0_29 = arith.constant 0 : index
    %48 = vector.load %arg2[%c0_26, %c2_27, %c0_28, %c0_29] : memref<1x4x2x128xf32, #tpu.memory_space<vmem>>, vector<1x1x2x128xf32>
    %49 = vector.shape_cast %48 : vector<1x1x2x128xf32> to vector<2x128xf32>
    %50 = arith.subf %49, %25 : vector<2x128xf32>
    %51 = math.exp %50 : vector<2x128xf32>
    %52 = arith.addf %42, %51 : vector<2x128xf32>
    %c2_i32_30 = arith.constant 2 : i32
    %53 = vector.broadcast %c2_i32_30 : i32 to vector<2x128xi32>
    %54 = arith.cmpi eq, %1, %53 : vector<2x128xi32>
    %cst_31 = arith.constant 0.000000e+00 : f32
    %55 = vector.broadcast %cst_31 : f32 to vector<2x128xf32>
    %56 = arith.select %54, %49, %55 : vector<2x128xi1>, vector<2x128xf32>
    %57 = arith.addf %47, %56 : vector<2x128xf32>
    %c0_32 = arith.constant 0 : index
    %c3_33 = arith.constant 3 : index
    %c0_34 = arith.constant 0 : index
    %c0_35 = arith.constant 0 : index
    %58 = vector.load %arg2[%c0_32, %c3_33, %c0_34, %c0_35] : memref<1x4x2x128xf32, #tpu.memory_space<vmem>>, vector<1x1x2x128xf32>
    %59 = vector.shape_cast %58 : vector<1x1x2x128xf32> to vector<2x128xf32>
    %60 = arith.subf %59, %25 : vector<2x128xf32>
    %61 = math.exp %60 : vector<2x128xf32>
    %62 = arith.addf %52, %61 : vector<2x128xf32>
    %c3_i32 = arith.constant 3 : i32
    %63 = vector.broadcast %c3_i32 : i32 to vector<2x128xi32>
    %64 = arith.cmpi eq, %1, %63 : vector<2x128xi32>
    %cst_36 = arith.constant 0.000000e+00 : f32
    %65 = vector.broadcast %cst_36 : f32 to vector<2x128xf32>
    %66 = arith.select %64, %59, %65 : vector<2x128xi1>, vector<2x128xf32>
    %67 = arith.addf %57, %66 : vector<2x128xf32>
    %68 = arith.subf %25, %67 : vector<2x128xf32>
    %69 = math.log %62 : vector<2x128xf32>
    %70 = arith.addf %68, %69 : vector<2x128xf32>
    %cst_37 = arith.constant 0.000000e+00 : f32
    %71 = vector.broadcast %cst_37 : f32 to vector<2x128xf32>
    %72 = arith.select %14, %70, %71 : vector<2x128xi1>, vector<2x128xf32>
    %73 = arith.extui %14 : vector<2x128xi1> to vector<2x128xi32>
    %74 = arith.sitofp %73 : vector<2x128xi32> to vector<2x128xf32>
    %75 = vector.shape_cast %72 : vector<2x128xf32> to vector<1x2x128xf32>
    %cst_38 = arith.constant dense<0.000000e+00> : vector<2x128xf32>
    %76 = vector.multi_reduction <add>, %75, %cst_38 [0] : vector<1x2x128xf32> to vector<2x128xf32>
    %c0_39 = arith.constant 0 : index
    %c0_40 = arith.constant 0 : index
    %c0_41 = arith.constant 0 : index
    %c0_42 = arith.constant 0 : index
    %77 = vector.load %arg4[%c0_39, %c0_40, %c0_41, %c0_42] : memref<1x1x2x128xf32, #tpu.memory_space<vmem>>, vector<1x1x2x128xf32>
    %78 = vector.shape_cast %77 : vector<1x1x2x128xf32> to vector<2x128xf32>
    %79 = vector.shape_cast %76 : vector<2x128xf32> to vector<1x1x2x128xf32>
    tpu.vector_store %arg4[%c0_39, %c0_40, %c0_41, %c0_42], %79 {strides = array<i32>} : memref<1x1x2x128xf32, #tpu.memory_space<vmem>>, vector<1x1x2x128xf32>,
    %80 = vector.shape_cast %74 : vector<2x128xf32> to vector<1x2x128xf32>
    %cst_43 = arith.constant dense<0.000000e+00> : vector<2x128xf32>
    %81 = vector.multi_reduction <add>, %80, %cst_43 [0] : vector<1x2x128xf32> to vector<2x128xf32>
    %c0_44 = arith.constant 0 : index
    %c0_45 = arith.constant 0 : index
    %c0_46 = arith.constant 0 : index
    %c0_47 = arith.constant 0 : index
    %82 = vector.load %arg5[%c0_44, %c0_45, %c0_46, %c0_47] : memref<1x1x2x128xf32, #tpu.memory_space<vmem>>, vector<1x1x2x128xf32>
    %83 = vector.shape_cast %82 : vector<1x1x2x128xf32> to vector<2x128xf32>
    %84 = vector.shape_cast %81 : vector<2x128xf32> to vector<1x1x2x128xf32>
    tpu.vector_store %arg5[%c0_44, %c0_45, %c0_46, %c0_47], %84 {strides = array<i32>} : memref<1x1x2x128xf32, #tpu.memory_space<vmem>>, vector<1x1x2x128xf32>,
    return
  }
  func.func @transform_0(%arg0: i32, %arg1: i32) -> (i32, i32, i32, i32) {
    %c0_i32 = arith.constant 0 : i32
    %c0_i32_0 = arith.constant 0 : i32
    %c0_i32_1 = arith.constant 0 : i32
    return %arg0, %c0_i32, %arg1, %c0_i32_0 : i32, i32, i32, i32
  }
  func.func @transform_1(%arg0: i32, %arg1: i32) -> (i32, i32, i32) {
    %c0_i32 = arith.constant 0 : i32
    %c0_i32_0 = arith.constant 0 : i32
    return %arg0, %arg1, %c0_i32 : i32, i32, i32
  }
  func.func @transform_2(%arg0: i32, %arg1: i32) -> (i32, i32, i32, i32) {
    %c0_i32 = arith.constant 0 : i32
    %c0_i32_0 = arith.constant 0 : i32
    %c0_i32_1 = arith.constant 0 : i32
    return %arg0, %arg1, %c0_i32, %c0_i32_0 : i32, i32, i32, i32
  }
  func.func @transform_3(%arg0: i32, %arg1: i32) -> (i32, i32, i32, i32) {
    %c0_i32 = arith.constant 0 : i32
    %c0_i32_0 = arith.constant 0 : i32
    %c0_i32_1 = arith.constant 0 : i32
    return %arg0, %arg1, %c0_i32, %c0_i32_0 : i32, i32, i32, i32
  }
}

</mosaic_0001>

<llo_original>
// kernel: tpu_custom_call.1
$region0: #{tpu_custom_call.1}
  #allocation0 [shape = 'u32[]', space=smem, size = 0x4, offset = 0x4, fixed_abs, tag = 'smem constant byte address 0x4 - core index']
  #allocation1 [shape = 'u32[144,128]{1,0:T(1,128)}', space=vmem, size = 0x12000, scoped, tag = 'internal scratch']
  %s0 = inlined_call_operand.hbm [shape: f32[2,4,2,128], index: 0, kind: input, shape index: {}]
  %s1 = inlined_call_operand.hbm [shape: s32[2,2,128], index: 1, kind: input, shape index: {}]
  %s2 = inlined_call_operand.hbm [shape: f32[2,1,2,128], index: 2, kind: output, shape index: {0}]
  %s3 = inlined_call_operand.hbm [shape: f32[2,1,2,128], index: 3, kind: output, shape index: {1}]
  %4 = xla_tuple %s2, %s3
  %s5 = sld [smem:[#allocation0]]
  $region57: #{tpu_custom_call.1} parent=0
    _
  %s7 = ssub.s32 1, %s5
  %s8 = scalar_select 0, %s7, %s5
  $region1: #{tpu_custom_call.1} parent=0
    #allocation2 [shape = 'u8[8192]{0}', space=vmem, size = 0x2000, scoped, tag = 'input window, operand 0']
    #allocation3 [shape = 's32[2]{0}', space=sflag, size = 0x8, scoped, tag = 'scoped memory for tpu_custom_call.1']
    #allocation4 [shape = 's32[2]{0}', space=sflag, size = 0x8, scoped, tag = 'scoped memory for tpu_custom_call.1']
    #allocation5 [shape = 'u8[2048]{0}', space=vmem, size = 0x800, scoped, tag = 'input window, operand 1']
    #allocation6 [shape = 's32[2]{0}', space=sflag, size = 0x8, scoped, tag = 'scoped memory for tpu_custom_call.1']
    #allocation7 [shape = 'u8[2048]{0}', space=vmem, size = 0x800, scoped, tag = 'output window, operand 0']
    #allocation8 [shape = 'u8[2048]{0}', space=vmem, size = 0x800, scoped, tag = 'output window, operand 1']
    #allocation9 [shape = 's32[2]{0}', space=sflag, size = 0x8, scoped, tag = 'scoped memory for tpu_custom_call.1']
    %9 = vsyncpa [#allocation3], 0
    %s10 = scalar_lea.sflag [#allocation3], 1
    %11 = vsyncpa %s10, 0
    %12 = vsyncpa [#allocation6], 0
    %s13 = scalar_lea.sflag [#allocation6], 1
    %14 = vsyncpa %s13, 0
    %15 = vsyncpa [#allocation4], 0
    %s16 = scalar_lea.sflag [#allocation4], 1
    %17 = vsyncpa %s16, 0
    %18 = vsyncpa [#allocation9], 0
    %s19 = scalar_lea.sflag [#allocation9], 1
    %20 = vsyncpa %s19, 0
    loop: start=0, step=1, limit=4
    $region2: #{tpu_custom_call.1} parent=1 // loop_pre_header
      _
    $region3: #{tpu_custom_call.1} parent=1 // loop_header
      %s22 = sphi 0, %s26
      %p23 = scmp.ge.s32.totalorder %s22, 4
      %s29 = sphi 0, %s41
      %s30 = sphi 0, %s37
      %s31 = sphi 0, %s29
      %s32 = sphi 0, %s30
      %s33 = sphi 0, %s31
      %s34 = sphi 0, %s32
      %s46 = sphi 0, %s48
      %s49 = sphi 0, %s46
      %s50 = sphi 0, %s49
      %s66 = sphi 0, %s50
      %s74 = sphi 0, %s76
      %s77 = sphi 0, %s74
      %s78 = sphi 0, %s77
      %s94 = sphi 0, %s78
      %s102 = sphi 0, %s104
      %s105 = sphi 0, %s102
      %s106 = sphi 0, %s105
      %s122 = sphi 0, %s106
      %s130 = sphi 0, %s132
      %s133 = sphi 0, %s130
      %s134 = sphi 0, %s133
      %s150 = sphi 0, %s134
    $region4: #{tpu_custom_call.1} parent=1 // loop_header_branch
      %25 = sbr.rel (%p23) target = $region8
    $region5: #{tpu_custom_call.1} parent=1 // loop_body
      %s27 = ssub.s32 %s22, 1
      %s28 = ssub.s32 %s22, 2
      %s35 = sadd.s32 1, %s30
      %p36 = scmp.ge.s32.totalorder %s35, 1
      %s37 = scalar_select %p36, 0, %s35
      %s38 = sadd.s32 1, %s29
      %s39 = scalar_select %p36, %s38, %s29
      %p40 = scmp.ge.s32.totalorder %s39, 2
      %s41 = scalar_select %p40, 0, %s39
      %s42 = ssub.s32 %s29, %s41
      %s43 = ssub.s32 %s30, %s37
      %s44 = sor.u32 %s42, %s43
      %p45 = scmp.eq.s32.totalorder %s44, 0
      %s47 = sadd.s32 %s46, 1
      %s48 = scalar_select %p45, %s46, %s47
      %p51 = pneg %p45
      %p52 = scmp.eq.s32.totalorder %s22, 1
      %p53 = por %p51, %p52
      %p54 = scmp.ne.s32.totalorder %s46, %s49
      %p55 = scmp.eq.s32.totalorder %s22, 0
      %p56 = por %p54, %p55
      %p57 = scmp.ne.s32.totalorder %s46, %s49
      %p58 = scmp.eq.s32.totalorder %s27, 1
      %p59 = por %p57, %p58
      %p60 = scmp.ne.s32.totalorder %s49, %s50
      %p61 = scmp.eq.s32.totalorder %s27, 0
      %p62 = por %p60, %p61
      %p63 = scmp.ne.s32.totalorder %s49, %s50
      %p64 = scmp.eq.s32.totalorder %s28, 1
      %p65 = por %p63, %p64
      %p67 = scmp.ne.s32.totalorder %s50, %s66
      %p68 = scmp.eq.s32.totalorder %s28, 0
      %p69 = por %p67, %p68
      %s70 = ssub.s32 %s29, %s41
      %s71 = ssub.s32 %s30, %s37
      %s72 = sor.u32 %s70, %s71
      %p73 = scmp.eq.s32.totalorder %s72, 0
      %s75 = sadd.s32 %s74, 1
      %s76 = scalar_select %p73, %s74, %s75
      %p79 = pneg %p73
      %p80 = scmp.eq.s32.totalorder %s22, 1
      %p81 = por %p79, %p80
      %p82 = scmp.ne.s32.totalorder %s74, %s77
      %p83 = scmp.eq.s32.totalorder %s22, 0
      %p84 = por %p82, %p83
      %p85 = scmp.ne.s32.totalorder %s74, %s77
      %p86 = scmp.eq.s32.totalorder %s27, 1
      %p87 = por %p85, %p86
      %p88 = scmp.ne.s32.totalorder %s77, %s78
      %p89 = scmp.eq.s32.totalorder %s27, 0
      %p90 = por %p88, %p89
      %p91 = scmp.ne.s32.totalorder %s77, %s78
      %p92 = scmp.eq.s32.totalorder %s28, 1
      %p93 = por %p91, %p92
      %p95 = scmp.ne.s32.totalorder %s78, %s94
      %p96 = scmp.eq.s32.totalorder %s28, 0
      %p97 = por %p95, %p96
      %s98 = ssub.s32 %s29, %s41
      %s99 = ssub.s32 %s30, %s37
      %s100 = sor.u32 %s98, %s99
      %p101 = scmp.eq.s32.totalorder %s100, 0
      %s103 = sadd.s32 %s102, 1
      %s104 = scalar_select %p101, %s102, %s103
      %p107 = pneg %p101
      %p108 = scmp.eq.s32.totalorder %s22, 1
      %p109 = por %p107, %p108
      %p110 = scmp.ne.s32.totalorder %s102, %s105
      %p111 = scmp.eq.s32.totalorder %s22, 0
      %p112 = por %p110, %p111
      %p113 = scmp.ne.s32.totalorder %s102, %s105
      %p114 = scmp.eq.s32.totalorder %s27, 1
      %p115 = por %p113, %p114
      %p116 = scmp.ne.s32.totalorder %s105, %s106
      %p117 = scmp.eq.s32.totalorder %s27, 0
      %p118 = por %p116, %p117
      %p119 = scmp.ne.s32.totalorder %s105, %s106
      %p120 = scmp.eq.s32.totalorder %s28, 1
      %p121 = por %p119, %p120
      %p123 = scmp.ne.s32.totalorder %s106, %s122
      %p124 = scmp.eq.s32.totalorder %s28, 0
      %p125 = por %p123, %p124
      %s126 = ssub.s32 %s29, %s41
      %s127 = ssub.s32 %s30, %s37
      %s128 = sor.u32 %s126, %s127
      %p129 = scmp.eq.s32.totalorder %s128, 0
      %s131 = sadd.s32 %s130, 1
      %s132 = scalar_select %p129, %s130, %s131
      %p135 = pneg %p129
      %p136 = scmp.eq.s32.totalorder %s22, 1
      %p137 = por %p135, %p136
      %p138 = scmp.ne.s32.totalorder %s130, %s133
      %p139 = scmp.eq.s32.totalorder %s22, 0
      %p140 = por %p138, %p139
      %p141 = scmp.ne.s32.totalorder %s130, %s133
      %p142 = scmp.eq.s32.totalorder %s27, 1
      %p143 = por %p141, %p142
      %p144 = scmp.ne.s32.totalorder %s133, %s134
      %p145 = scmp.eq.s32.totalorder %s27, 0
      %p146 = por %p144, %p145
      %p147 = scmp.ne.s32.totalorder %s133, %s134
      %p148 = scmp.eq.s32.totalorder %s28, 1
      %p149 = por %p147, %p148
      %p151 = scmp.ne.s32.totalorder %s134, %s150
      %p152 = scmp.eq.s32.totalorder %s28, 0
      %p153 = por %p151, %p152
      %p154 = scmp.le.s32.totalorder 1, %s22
      %p155 = scmp.lt.s32.totalorder %s22, 3
      %p156 = pnand %p154, %p155
      %p157 = pneg %p156
      // Predicated region
      $region9: #{tpu_custom_call.1} parent=5 // pred_check
        _
      $region10: #{tpu_custom_call.1} parent=5 // pred_check_branch
        %159 = sbr.rel (%p156) target = $region12
      $region11: #{tpu_custom_call.1} parent=5 // pred_region
        %s160 = ssub.s32 %s22, 1
      $region12: #{tpu_custom_call.1} parent=5 // pred_fallthru
        _
      %p161 = scmp.lt.s32.totalorder %s22, 2
      // Predicated region
      $region13: #{tpu_custom_call.1} parent=5 // pred_check
        %p162 = pneg %p161
      $region14: #{tpu_custom_call.1} parent=5 // pred_check_branch
        %164 = sbr.rel (%p162) target = $region16
      $region15: #{tpu_custom_call.1} parent=5 // pred_region
        // Predicated region
        $region17: #{tpu_custom_call.1} parent=15 // pred_check
          %p165 = pneg %p56
        $region18: #{tpu_custom_call.1} parent=15 // pred_check_branch
          %167 = sbr.rel (%p165) target = $region20
        $region19: #{tpu_custom_call.1} parent=15 // pred_region
          %s168 = sand.u32 %s46, 1
          %s169 = scalar_lea.sflag [#allocation3], %s168
          %s170 = sand.u32 %s46, 1
          %s171 = smul.addr %s170, 8
          %s172 = scalar_lea.vmem [#allocation2], %s171
          %s174 = ssub.s32 128, 128
          %175 = vsyncadd %s169, %s174
          %s176 = smul.addr %s29, 4
          %s177 = sadd.s32 %s30, %s176
          %s178 = smul.addr %s177, 32
          %s179 = scalar_lea.hbm %s0, %s178
          %s180 = sshll.u32 %s172, 4
          %s181 = int_to_ptr.vmem [resolvable:$true] %s180
          %186 = dma.hbm_to_vmem [thread:$0]  %s179, 128, %s181, %s169, 32, 32, 2
        $region20: #{tpu_custom_call.1} parent=15 // pred_fallthru
          _
        // Predicated region
        $region21: #{tpu_custom_call.1} parent=15 // pred_check
          %p187 = pneg %p84
        $region22: #{tpu_custom_call.1} parent=15 // pred_check_branch
          %189 = sbr.rel (%p187) target = $region24
        $region23: #{tpu_custom_call.1} parent=15 // pred_region
          %s190 = sand.u32 %s74, 1
          %s191 = scalar_lea.sflag [#allocation6], %s190
          %s192 = sand.u32 %s74, 1
          %s193 = smul.addr %s192, 2
          %s194 = scalar_lea.vmem [#allocation5], %s193
          %s196 = ssub.s32 32, 32
          %197 = vsyncadd %s191, %s196
          %s198 = sadd.s32 %s30, %s29
          %s199 = smul.addr %s198, 32
          %s200 = scalar_lea.hbm %s1, %s199
          %s202 = sshll.u32 %s194, 4
          %s203 = int_to_ptr.vmem [resolvable:$true] %s202
          %205 = dma.hbm_to_vmem [thread:$0]  %s200, 32, %s203, %s191
        $region24: #{tpu_custom_call.1} parent=15 // pred_fallthru
          _
      $region16: #{tpu_custom_call.1} parent=5 // pred_fallthru
        _
      %p206 = scmp.le.s32.totalorder 1, %s22
      %p207 = scmp.lt.s32.totalorder %s22, 3
      %p208 = pnand %p206, %p207
      %p209 = pneg %p208
      // Predicated region
      $region25: #{tpu_custom_call.1} parent=5 // pred_check
        _
      $region26: #{tpu_custom_call.1} parent=5 // pred_check_branch
        %211 = sbr.rel (%p208) target = $region28
      $region27: #{tpu_custom_call.1} parent=5 // pred_region
        %s212 = ssub.s32 %s22, 1
        %s213 = sand.u32 %s49, 1
        %s214 = scalar_lea.sflag [#allocation3], %s213
        %s215 = sand.u32 %s49, 1
        %s216 = smul.addr %s215, 8
        %s217 = scalar_lea.vmem [#allocation2], %s216
        // Predicated region
        $region29: #{tpu_custom_call.1} parent=27 // pred_check
          %p218 = pneg %p62
        $region30: #{tpu_custom_call.1} parent=27 // pred_check_branch
          %220 = sbr.rel (%p218) target = $region32
        $region31: #{tpu_custom_call.1} parent=27 // pred_region
          %221 = dma.done %s214, 128
        $region32: #{tpu_custom_call.1} parent=27 // pred_fallthru
          _
        %s222 = sand.u32 %s77, 1
        %s223 = scalar_lea.sflag [#allocation6], %s222
        %s224 = sand.u32 %s77, 1
        %s225 = smul.addr %s224, 2
        %s226 = scalar_lea.vmem [#allocation5], %s225
        // Predicated region
        $region33: #{tpu_custom_call.1} parent=27 // pred_check
          %p227 = pneg %p90
        $region34: #{tpu_custom_call.1} parent=27 // pred_check_branch
          %229 = sbr.rel (%p227) target = $region36
        $region35: #{tpu_custom_call.1} parent=27 // pred_region
          %230 = dma.done %s223, 32
        $region36: #{tpu_custom_call.1} parent=27 // pred_fallthru
          _
        %s231 = sand.u32 %s49, 1
        %s232 = scalar_lea.sflag [#allocation3], %s231
        %s233 = sand.u32 %s49, 1
        %s234 = smul.addr %s233, 8
        %s235 = scalar_lea.vmem [#allocation2], %s234
        %p236 = pneg %p62
        %p237 = pneg %p59
        %s238 = sand.u32 %s77, 1
        %s239 = scalar_lea.sflag [#allocation6], %s238
        %s240 = sand.u32 %s77, 1
        %s241 = smul.addr %s240, 2
        %s242 = scalar_lea.vmem [#allocation5], %s241
        %p243 = pneg %p90
        %p244 = pneg %p87
        %p245 = pneg %p118
        %p246 = pneg %p115
        %s247 = sand.u32 %s105, 1
        %s248 = scalar_lea.sflag [#allocation4], %s247
        %s249 = sand.u32 %s105, 1
        %s250 = smul.addr %s249, 2
        %s251 = scalar_lea.vmem [#allocation7], %s250
        %p252 = pneg %p146
        %p253 = pneg %p143
        %s254 = sand.u32 %s133, 1
        %s255 = scalar_lea.sflag [#allocation9], %s254
        %s256 = sand.u32 %s133, 1
        %s257 = smul.addr %s256, 2
        %s258 = scalar_lea.vmem [#allocation8], %s257
        %v259 = vld [vmem:[%s226] sm:$0x3]
        %s260 = smul.u32 %s32, 2
        %v261 = vlaneseq
        %v262 = vshrl.u32 %v261, 7
        %v263 = vstv %s260
        %v264 = vadd.s32 %v262, %v263
        %v265 = vlaneseq
        %v266 = vand.u32 %v265, 127
        %v267 = vmul.u32 %v264, 128
        %v268 = vadd.s32 %v267, %v266
        %vm269 = vcmp.ne.s32.totalorder %v259, 4
        %vm270 = vcmp.lt.s32.totalorder %v268, 256
        %vm271 = vmand %vm269, %vm270
        %v272 = vld [vmem:[%s217] sm:$0x3]
        %s273 = scalar_lea.vmem %s217, 2 [#allocation2]
        %v274 = vld [vmem:[%s273] sm:$0x3]
        %v275 = vmax.f32 %v272, %v274
        %s276 = scalar_lea.vmem %s217, 4 [#allocation2]
        %v277 = vld [vmem:[%s276] sm:$0x3]
        %v278 = vmax.f32 %v275, %v277
        %s279 = scalar_lea.vmem %s217, 6 [#allocation2]
        %v280 = vld [vmem:[%s279] sm:$0x3]
        %v281 = vmax.f32 %v278, %v280
        %v282 = vsub.f32 %v272, %v281
        %v283 = vmul.f32 %v282, 1.442695
        %v284 = vpow.pop %v283
        %v285 = vadd.f32 %v284, 0.0
        %vm286 = vcmp.eq.s32.totalorder %v259, 0
        %v287 = vsel %vm286, %v272, 0.0
        %v288 = vadd.f32 %v287, 0.0
        %v289 = vsub.f32 %v274, %v281
        %v290 = vmul.f32 %v289, 1.442695
        %v291 = vpow.pop %v290
        %v292 = vadd.f32 %v285, %v291
        %vm293 = vcmp.eq.s32.totalorder %v259, 1
        %v294 = vsel %vm293, %v274, 0.0
        %v295 = vadd.f32 %v288, %v294
        %v296 = vsub.f32 %v277, %v281
        %v297 = vmul.f32 %v296, 1.442695
        %v298 = vpow.pop %v297
        %v299 = vadd.f32 %v292, %v298
        %vm300 = vcmp.eq.s32.totalorder %v259, 2
        %v301 = vsel %vm300, %v277, 0.0
        %v302 = vadd.f32 %v295, %v301
        %v303 = vsub.f32 %v280, %v281
        %v304 = vmul.f32 %v303, 1.442695
        %v305 = vpow.pop %v304
        %v306 = vadd.f32 %v299, %v305
        %vm307 = vcmp.eq.s32.totalorder %v259, 3
        %v308 = vsel %vm307, %v280, 0.0
        %v309 = vadd.f32 %v302, %v308
        %v310 = vsub.f32 %v281, %v309
        %v311 = vlog2.pop %v306
        %v312 = vmul.f32 %v311, 0.6931472
        %v313 = vadd.f32 %v310, %v312
        %v314 = vsel %vm271, %v313, 0.0
        %v315 = vsel %vm271, 1, 0
        %v316 = vcvt.s32.f32 %v315
        %v317 = vadd.f32 %v314, 0.0
        %318 = vst [vmem:[%s251] sm:$0x3] %v317
        %v319 = vadd.f32 %v316, 0.0
        %320 = vst [vmem:[%s258] sm:$0x3] %v319
        %s321 = sand.u32 %s105, 1
        %s322 = scalar_lea.sflag [#allocation4], %s321
        %s323 = sand.u32 %s105, 1
        %s324 = smul.addr %s323, 2
        %s325 = scalar_lea.vmem [#allocation7], %s324
        %s326 = sand.u32 %s133, 1
        %s327 = scalar_lea.sflag [#allocation9], %s326
        %s328 = sand.u32 %s133, 1
        %s329 = smul.addr %s328, 2
        %s330 = scalar_lea.vmem [#allocation8], %s329
        // Predicated region
        $region37: #{tpu_custom_call.1} parent=27 // pred_check
          %p331 = pneg %p115
        $region38: #{tpu_custom_call.1} parent=27 // pred_check_branch
          %333 = sbr.rel (%p331) target = $region40
        $region39: #{tpu_custom_call.1} parent=27 // pred_region
          %s335 = ssub.s32 32, 32
          %336 = vsyncadd %s322, %s335
          %s337 = sadd.s32 %s32, %s31
          %s338 = smul.addr %s337, 32
          %s339 = scalar_lea.hbm %s2, %s338
          %s341 = sshll.u32 %s325, 4
          %s342 = int_to_ptr.vmem [resolvable:$true] %s341
          %344 = dma.vmem_to_hbm [thread:$0]  %s342, 32, %s339, %s322
        $region40: #{tpu_custom_call.1} parent=27 // pred_fallthru
          _
        // Predicated region
        $region41: #{tpu_custom_call.1} parent=27 // pred_check
          %p345 = pneg %p143
        $region42: #{tpu_custom_call.1} parent=27 // pred_check_branch
          %347 = sbr.rel (%p345) target = $region44
        $region43: #{tpu_custom_call.1} parent=27 // pred_region
          %s349 = ssub.s32 32, 32
          %350 = vsyncadd %s327, %s349
          %s351 = sadd.s32 %s32, %s31
          %s352 = smul.addr %s351, 32
          %s353 = scalar_lea.hbm %s3, %s352
          %s355 = sshll.u32 %s330, 4
          %s356 = int_to_ptr.vmem [resolvable:$true] %s355
          %358 = dma.vmem_to_hbm [thread:$0]  %s356, 32, %s353, %s327
        $region44: #{tpu_custom_call.1} parent=27 // pred_fallthru
          _
      $region28: #{tpu_custom_call.1} parent=5 // pred_fallthru
        _
      %p359 = scmp.le.s32.totalorder 2, %s22
      // Predicated region
      $region45: #{tpu_custom_call.1} parent=5 // pred_check
        %p360 = pneg %p359
      $region46: #{tpu_custom_call.1} parent=5 // pred_check_branch
        %362 = sbr.rel (%p360) target = $region48
      $region47: #{tpu_custom_call.1} parent=5 // pred_region
        %s363 = ssub.s32 %s22, 2
        // Predicated region
        $region49: #{tpu_custom_call.1} parent=47 // pred_check
          %p364 = pneg %p121
        $region50: #{tpu_custom_call.1} parent=47 // pred_check_branch
          %366 = sbr.rel (%p364) target = $region52
        $region51: #{tpu_custom_call.1} parent=47 // pred_region
          %s367 = sand.u32 %s106, 1
          %s368 = scalar_lea.sflag [#allocation4], %s367
          %s369 = sand.u32 %s106, 1
          %s370 = smul.addr %s369, 2
          %s371 = scalar_lea.vmem [#allocation7], %s370
          %372 = dma.done %s368, 32
        $region52: #{tpu_custom_call.1} parent=47 // pred_fallthru
          _
        // Predicated region
        $region53: #{tpu_custom_call.1} parent=47 // pred_check
          %p373 = pneg %p149
        $region54: #{tpu_custom_call.1} parent=47 // pred_check_branch
          %375 = sbr.rel (%p373) target = $region56
        $region55: #{tpu_custom_call.1} parent=47 // pred_region
          %s376 = sand.u32 %s134, 1
          %s377 = scalar_lea.sflag [#allocation9], %s376
          %s378 = sand.u32 %s134, 1
          %s379 = smul.addr %s378, 2
          %s380 = scalar_lea.vmem [#allocation8], %s379
          %381 = dma.done %s377, 32
        $region56: #{tpu_custom_call.1} parent=47 // pred_fallthru
          _
      $region48: #{tpu_custom_call.1} parent=5 // pred_fallthru
        _
    $region6: #{tpu_custom_call.1} parent=1 // loop_footer
      %s26 = sadd.s32 1, %s22
    $region7: #{tpu_custom_call.1} parent=1 // loop_footer_branch
      %21 = sbr.rel target = $region3
    $region8: #{tpu_custom_call.1} parent=1 // loop_exit
      _
    %382 = vsyncpa [#allocation3], 1
    %s383 = scalar_lea.sflag [#allocation3], 1
    %384 = vsyncpa %s383, 1
    %385 = vsyncpa [#allocation6], 1
    %s386 = scalar_lea.sflag [#allocation6], 1
    %387 = vsyncpa %s386, 1
    %388 = vsyncpa [#allocation4], 1
    %s389 = scalar_lea.sflag [#allocation4], 1
    %390 = vsyncpa %s389, 1
    %391 = vsyncpa [#allocation9], 1
    %s392 = scalar_lea.sflag [#allocation9], 1
    %393 = vsyncpa %s392, 1

</llo_original>
